<compile_context>
chip_gen: v6e
topology: v6e:2x2x1
jax: 0.10.0
libtpu: 0.0.40
codegen_flags: <defaults>
</compile_context>

<pallas_src>
import functools

import jax
import jax.numpy as jnp
from jax.experimental import pallas as pl
from jax.experimental.pallas import tpu as pltpu


def _round_up(a: int, b: int) -> int:
    return -(-a // b) * b


def _pick_channel_group(C: int, Lh: int) -> int:
    """Smallest #channels whose packed pooled width is a multiple of 128."""
    if Lh % 128 == 0:
        return 1
    for g in range(2, C + 1):
        if (g * Lh) % 128 == 0:
            return g
    return C  # single group; K padded once to a 128 multiple


def string_embed_cnn_kernel(cw_ref, xe_ref, xo_ref, wd_ref, b_ref, o_ref, *,
                            C, Lh, cs_per_grp, n_grp, Kg_pad):
    # cw_ref: (3*C,)                 SMEM f32   conv weights [c0k0,c0k1,c0k2,c1k0,...]
    # xe_ref: (Bt, Lh_pad)           VMEM bf16  even string positions x[2p]
    # xo_ref: (Bt, Lh_pad)           VMEM bf16  odd  string positions x[2p+1]
    # wd_ref: (n_grp, Kg_pad, E_pad) VMEM bf16  dense weights, channel-major per group
    # b_ref : (1, E_pad)             VMEM f32   dense bias
    # o_ref : (Bt, E_pad)            VMEM f32
    xe = xe_ref[...]
    xo = xo_ref[...]
    Bt, Lh_pad = xe.shape
    E_pad = b_ref.shape[1]

    # Shifted neighbours with the exact Conv1d zero padding (no circular
    # wrap => no boundary masks needed for any Lh / Lh_pad combination).
    zcol = jnp.zeros((Bt, 1), xe.dtype)
    xo_prev = jnp.concatenate([zcol, xo[:, :Lh_pad - 1]], axis=1)   # xo[p-1]
    xe_next = jnp.concatenate([xe[:, 1:], zcol], axis=1)            # xe[p+1]

    if Lh != Lh_pad:  # drop the zero lane padding before packing channels
        xe, xo = xe[:, :Lh], xo[:, :Lh]
        xo_prev, xe_next = xo_prev[:, :Lh], xe_next[:, :Lh]

    acc = jnp.zeros((Bt, E_pad), jnp.float32)
    for gi in range(n_grp):                          # static: C, n_grp are small
        parts = []
        for ci in range(cs_per_grp):
            c = gi * cs_per_grp + ci
            if c >= C:
                break
            w0 = cw_ref[3 * c + 0]
            w1 = cw_ref[3 * c + 1]
            w2 = cw_ref[3 * c + 2]
            # Conv1d(k=3, pad=1) + ReLU + max_pool1d(k=2) at once, lane-dense
            # VPU work (f32 scalar weights promote the bf16 lanes to f32).
            h_even = w0 * xo_prev + w1 * xe + w2 * xo      # conv @ position 2p
            h_odd = w0 * xe + w1 * xo + w2 * xe_next       # conv @ position 2p+1
            parts.append(
                jnp.maximum(jnp.maximum(h_even, h_odd), 0.0).astype(wd_ref.dtype))
        act = parts[0] if len(parts) == 1 else jnp.concatenate(parts, axis=1)
        if act.shape[1] != Kg_pad:           # ragged last group / pad-once fallback
            act = jnp.concatenate(
                [act, jnp.zeros((Bt, Kg_pad - act.shape[1]), act.dtype)], axis=1)
        # bf16 x bf16 -> f32 MXU accumulate; per-group dots keep temporaries
        # small and let the next group's conv overlap this group's MXU push.
        acc = acc + jnp.dot(act, wd_ref[gi], preferred_element_type=jnp.float32)

    o_ref[...] = acc + b_ref[...]


def prepare_params(conv_w, dense_w, dense_b, *, weight_dtype=jnp.bfloat16):
    """Repack PyTorch-layout parameters for the kernel.  Call ONCE at load time."""
    C, cin, K = conv_w.shape
    E, flat = dense_w.shape
    assert cin == 1 and K == 3, "Conv1d(1, C, kernel_size=3) expected"
    assert flat % C == 0, "flat_size must be C * (L // 2)"
    Lh = flat // C

    cs_per_grp = _pick_channel_group(C, Lh)
    n_grp = -(-C // cs_per_grp)
    Kg_pad = _round_up(cs_per_grp * Lh, 128)
    E_pad = _round_up(E, 128)

    cw_flat = jnp.asarray(conv_w, jnp.float32).reshape(3 * C)

    # PyTorch flat index f = c*Lh + p  ->  (C, Lh, E), then pack channel groups.
    wd = jnp.asarray(dense_w, jnp.float32).reshape(E, C, Lh).transpose(1, 2, 0)
    wd = jnp.pad(wd, ((0, n_grp * cs_per_grp - C), (0, 0), (0, E_pad - E)))
    wd = wd.reshape(n_grp, cs_per_grp * Lh, E_pad)
    wd = jnp.pad(wd, ((0, 0), (0, Kg_pad - cs_per_grp * Lh), (0, 0)))
    wd = wd.astype(weight_dtype)

    bias = jnp.pad(jnp.asarray(dense_b, jnp.float32).reshape(1, E),
                   ((0, 0), (0, E_pad - E)))

    meta = dict(C=C, E=E, Lh=Lh, cs_per_grp=cs_per_grp, n_grp=n_grp,
                Kg_pad=Kg_pad, E_pad=E_pad)
    return (cw_flat, wd, bias), meta


def string_embed_cnn(x3d, params, meta, *, in_dtype=jnp.bfloat16):
    """Forward pass.  x3d: (B, max_str_len, alphabet_len) float one-hot tensor."""
    cw_flat, wd, bias = params
    C, Lh, E, E_pad = meta["C"], meta["Lh"], meta["E"], meta["E_pad"]
    n_grp, Kg_pad = meta["n_grp"], meta["Kg_pad"]

    B, S, A = x3d.shape
    L = S * A
    assert L % 2 == 0 and L // 2 == Lh, "input shape inconsistent with params"

    Lh_pad = _round_up(Lh, 128)

    # Batch tile: sublane aligned, >= 2 grid steps when the batch allows it
    # (so the "parallel" grid axis can use both v7x TensorCores) while keeping
    # batch padding waste small.
    if B <= 16:
        Bt = 16
    elif B <= 512:
        Bt = _round_up(-(-B // 2), 16)
    else:
        Bt = 256
    B_pad = _round_up(B, Bt)
    nb = B_pad // Bt

    # Input plumbing: one cast + deinterleave + pad (bf16 halves the DMA).
    # TODO(synk): emit xe/xo (bf16, padded) directly from the upstream
    # StringNumericalizer one-hot encoder to remove this extra HBM pass.
    xpair = x3d.reshape(B, Lh, 2).astype(in_dtype)
    xe = jnp.pad(xpair[:, :, 0], ((0, B_pad - B), (0, Lh_pad - Lh)))
    xo = jnp.pad(xpair[:, :, 1], ((0, B_pad - B), (0, Lh_pad - Lh)))

    # Explicit VMEM budget: resident weights + double-buffered xe/xo/out blocks,
    # with headroom for in-kernel temporaries.
    in_bytes = jnp.dtype(in_dtype).itemsize
    footprint = (wd.size * wd.dtype.itemsize + bias.size * 4
                 + 2 * 2 * Bt * Lh_pad * in_bytes
                 + 2 * Bt * E_pad * 4)
    vmem_limit = int(min(1.5 * footprint + (16 << 20), 96 << 20))

    kernel = functools.partial(
        string_embed_cnn_kernel, C=C, Lh=Lh,
        cs_per_grp=meta["cs_per_grp"], n_grp=n_grp, Kg_pad=Kg_pad)

    # TODO(synk): field_config.embed_dropout_p Dropout is identity in eval mode;
    # training-mode RNG dropout is not implemented here.
    out = pl.pallas_call(
        kernel,
        out_shape=jax.ShapeDtypeStruct((B_pad, E_pad), jnp.float32),
        grid=(nb,),
        in_specs=[
            pl.BlockSpec((3 * C,), lambda i: (0,),
                         memory_space=pltpu.MemorySpace.SMEM),    # conv weights
            pl.BlockSpec((Bt, Lh_pad), lambda i: (i, 0)),         # xe (batch tiled)
            pl.BlockSpec((Bt, Lh_pad), lambda i: (i, 0)),         # xo (batch tiled)
            pl.BlockSpec((n_grp, Kg_pad, E_pad), lambda i: (0, 0, 0)),  # dense W (resident)
            pl.BlockSpec((1, E_pad), lambda i: (0, 0)),           # dense bias (resident)
        ],
        out_specs=pl.BlockSpec((Bt, E_pad), lambda i: (i, 0)),
        compiler_params=pltpu.CompilerParams(
            dimension_semantics=("parallel",),
            vmem_limit_bytes=vmem_limit),
    )(cw_flat, xe, xo, wd, bias)

    return out[:B, :E]


def reference_forward(x3d, conv_w, dense_w, dense_b):
    """Pure-JAX reference mirroring the PyTorch forward (eval mode, f32)."""
    B = x3d.shape[0]
    x = x3d.reshape(B, 1, -1)
    h = jax.lax.conv_general_dilated(
        x, conv_w, window_strides=(1,), padding=((1, 1),),
        dimension_numbers=("NCH", "OIH", "NCH"))
    h = jnp.maximum(h, 0.0)
    Bc, C, L = h.shape
    pooled = h.reshape(Bc, C, L // 2, 2).max(axis=-1)
    flat = pooled.reshape(B, -1)
    return flat @ dense_w.T + dense_b


if __name__ == "__main__":
    # Small shapes consistent with the module's __init__:
    MAX_STR_LEN = 16       # field_config.max_str_len
    ALPHABET_LEN = 8       # len(field_config.alphabet)
    N_CHANNELS = 4         # field_config.n_channels
    EMBEDDING_SIZE = 32
    B = 2
    L = MAX_STR_LEN * ALPHABET_LEN                          # 128
    FLAT = (MAX_STR_LEN // 2) * ALPHABET_LEN * N_CHANNELS   # 256

    key = jax.random.PRNGKey(0)
    k1, k2, k3, k4 = jax.random.split(key, 4)
    # Deterministic synthetic parameters / input (no checkpoint loading).
    x = jax.random.normal(k1, (B, MAX_STR_LEN, ALPHABET_LEN), jnp.float32)
    conv_w = jax.random.normal(k2, (N_CHANNELS, 1, 3), jnp.float32) * 0.5
    dense_w = jax.random.normal(k3, (EMBEDDING_SIZE, FLAT), jnp.float32) * 0.1
    dense_b = jax.random.normal(k4, (EMBEDDING_SIZE,), jnp.float32) * 0.1

    # Parameter repacking is hoisted out of the per-call path (do at load time).
    params, meta = prepare_params(conv_w, dense_w, dense_b)

    out = string_embed_cnn(x, params, meta)
    out = jax.block_until_ready(out)

    ref = reference_forward(x, conv_w, dense_w, dense_b)
    assert out.shape == (B, EMBEDDING_SIZE)
    # Tolerance widened slightly: dense matmul operands are bf16 (f32 acc).
    assert jnp.allclose(out, ref, atol=5e-2, rtol=5e-2), (
        f"mismatch: max abs err {jnp.max(jnp.abs(out - ref))}")
    print("KERNEL_OK")
</pallas_src>

<mosaic_0001>
module attributes {stable_mosaic.version = 11 : i64} {
  func.func @string_embed_cnn_kernel(%arg0: i32, %arg1: memref<12xf32, #tpu.memory_space<smem>>, %arg2: memref<16x128xbf16, #tpu.memory_space<vmem>>, %arg3: memref<16x128xbf16, #tpu.memory_space<vmem>>, %arg4: memref<2x128x128xbf16, #tpu.memory_space<vmem>>, %arg5: memref<1x128xf32, #tpu.memory_space<vmem>>, %arg6: memref<16x128xf32, #tpu.memory_space<vmem>>) attributes {dimension_semantics = [#tpu.dimension_semantics<parallel>], iteration_bounds = array<i64: 1>, scalar_prefetch = 0 : i64, scratch_operands = 0 : i64, tpu.core_type = #tpu.core_type<tc>, window_params = [{transform_indices = @transform_0, window_bounds = array<i64: 12>}, {transform_indices = @transform_1, window_bounds = array<i64: 16, 128>}, {transform_indices = @transform_2, window_bounds = array<i64: 16, 128>}, {pipeline_mode = #tpu.pipeline_mode<synchronous>, transform_indices = @transform_3, window_bounds = array<i64: 2, 128, 128>}, {pipeline_mode = #tpu.pipeline_mode<synchronous>, transform_indices = @transform_4, window_bounds = array<i64: 1, 128>}, {transform_indices = @transform_5, window_bounds = array<i64: 16, 128>}]} {
    %c0 = arith.constant 0 : index
    %c0_0 = arith.constant 0 : index
    %0 = vector.load %arg2[%c0, %c0_0] : memref<16x128xbf16, #tpu.memory_space<vmem>>, vector<16x128xbf16>
    %c0_1 = arith.constant 0 : index
    %c0_2 = arith.constant 0 : index
    %1 = vector.load %arg3[%c0_1, %c0_2] : memref<16x128xbf16, #tpu.memory_space<vmem>>, vector<16x128xbf16>
    %cst = arith.constant 0.000000e+00 : bf16
    %2 = vector.broadcast %cst : bf16 to vector<16x1xbf16>
    %3 = vector.extract_strided_slice %1 {offsets = [0, 0], sizes = [16, 127], strides = [1, 1]} : vector<16x128xbf16> to vector<16x127xbf16>
    %4 = tpu.concatenate %2, %3 in 1 : vector<16x1xbf16>, vector<16x127xbf16> -> vector<16x128xbf16>
    %5 = vector.extract_strided_slice %0 {offsets = [0, 1], sizes = [16, 127], strides = [1, 1]} : vector<16x128xbf16> to vector<16x127xbf16>
    %6 = tpu.concatenate %5, %2 in 1 : vector<16x127xbf16>, vector<16x1xbf16> -> vector<16x128xbf16>
    %7 = vector.extract_strided_slice %0 {offsets = [0, 0], sizes = [16, 64], strides = [1, 1]} : vector<16x128xbf16> to vector<16x64xbf16>
    %8 = vector.extract_strided_slice %1 {offsets = [0, 0], sizes = [16, 64], strides = [1, 1]} : vector<16x128xbf16> to vector<16x64xbf16>
    %9 = vector.extract_strided_slice %4 {offsets = [0, 0], sizes = [16, 64], strides = [1, 1]} : vector<16x128xbf16> to vector<16x64xbf16>
    %10 = vector.extract_strided_slice %6 {offsets = [0, 0], sizes = [16, 64], strides = [1, 1]} : vector<16x128xbf16> to vector<16x64xbf16>
    %cst_3 = arith.constant 0.000000e+00 : f32
    %11 = vector.broadcast %cst_3 : f32 to vector<16x128xf32>
    %c0_4 = arith.constant 0 : index
    %12 = memref.load %arg1[%c0_4] : memref<12xf32, #tpu.memory_space<smem>>
    %c1 = arith.constant 1 : index
    %13 = memref.load %arg1[%c1] : memref<12xf32, #tpu.memory_space<smem>>
    %c2 = arith.constant 2 : index
    %14 = memref.load %arg1[%c2] : memref<12xf32, #tpu.memory_space<smem>>
    %15 = arith.extf %9 : vector<16x64xbf16> to vector<16x64xf32>
    %16 = vector.broadcast %12 : f32 to vector<16x64xf32>
    %17 = arith.mulf %16, %15 : vector<16x64xf32>
    %18 = arith.extf %7 : vector<16x64xbf16> to vector<16x64xf32>
    %19 = vector.broadcast %13 : f32 to vector<16x64xf32>
    %20 = arith.mulf %19, %18 : vector<16x64xf32>
    %21 = arith.addf %17, %20 : vector<16x64xf32>
    %22 = arith.extf %8 : vector<16x64xbf16> to vector<16x64xf32>
    %23 = vector.broadcast %14 : f32 to vector<16x64xf32>
    %24 = arith.mulf %23, %22 : vector<16x64xf32>
    %25 = arith.addf %21, %24 : vector<16x64xf32>
    %26 = arith.extf %7 : vector<16x64xbf16> to vector<16x64xf32>
    %27 = vector.broadcast %12 : f32 to vector<16x64xf32>
    %28 = arith.mulf %27, %26 : vector<16x64xf32>
    %29 = arith.extf %8 : vector<16x64xbf16> to vector<16x64xf32>
    %30 = vector.broadcast %13 : f32 to vector<16x64xf32>
    %31 = arith.mulf %30, %29 : vector<16x64xf32>
    %32 = arith.addf %28, %31 : vector<16x64xf32>
    %33 = arith.extf %10 : vector<16x64xbf16> to vector<16x64xf32>
    %34 = vector.broadcast %14 : f32 to vector<16x64xf32>
    %35 = arith.mulf %34, %33 : vector<16x64xf32>
    %36 = arith.addf %32, %35 : vector<16x64xf32>
    %37 = arith.maximumf %25, %36 : vector<16x64xf32>
    %cst_5 = arith.constant 0.000000e+00 : f32
    %38 = vector.broadcast %cst_5 : f32 to vector<16x64xf32>
    %39 = arith.maximumf %37, %38 : vector<16x64xf32>
    %40 = arith.truncf %39 : vector<16x64xf32> to vector<16x64xbf16>
    %c3 = arith.constant 3 : index
    %41 = memref.load %arg1[%c3] : memref<12xf32, #tpu.memory_space<smem>>
    %c4 = arith.constant 4 : index
    %42 = memref.load %arg1[%c4] : memref<12xf32, #tpu.memory_space<smem>>
    %c5 = arith.constant 5 : index
    %43 = memref.load %arg1[%c5] : memref<12xf32, #tpu.memory_space<smem>>
    %44 = arith.extf %9 : vector<16x64xbf16> to vector<16x64xf32>
    %45 = vector.broadcast %41 : f32 to vector<16x64xf32>
    %46 = arith.mulf %45, %44 : vector<16x64xf32>
    %47 = arith.extf %7 : vector<16x64xbf16> to vector<16x64xf32>
    %48 = vector.broadcast %42 : f32 to vector<16x64xf32>
    %49 = arith.mulf %48, %47 : vector<16x64xf32>
    %50 = arith.addf %46, %49 : vector<16x64xf32>
    %51 = arith.extf %8 : vector<16x64xbf16> to vector<16x64xf32>
    %52 = vector.broadcast %43 : f32 to vector<16x64xf32>
    %53 = arith.mulf %52, %51 : vector<16x64xf32>
    %54 = arith.addf %50, %53 : vector<16x64xf32>
    %55 = arith.extf %7 : vector<16x64xbf16> to vector<16x64xf32>
    %56 = vector.broadcast %41 : f32 to vector<16x64xf32>
    %57 = arith.mulf %56, %55 : vector<16x64xf32>
    %58 = arith.extf %8 : vector<16x64xbf16> to vector<16x64xf32>
    %59 = vector.broadcast %42 : f32 to vector<16x64xf32>
    %60 = arith.mulf %59, %58 : vector<16x64xf32>
    %61 = arith.addf %57, %60 : vector<16x64xf32>
    %62 = arith.extf %10 : vector<16x64xbf16> to vector<16x64xf32>
    %63 = vector.broadcast %43 : f32 to vector<16x64xf32>
    %64 = arith.mulf %63, %62 : vector<16x64xf32>
    %65 = arith.addf %61, %64 : vector<16x64xf32>
    %66 = arith.maximumf %54, %65 : vector<16x64xf32>
    %cst_6 = arith.constant 0.000000e+00 : f32
    %67 = vector.broadcast %cst_6 : f32 to vector<16x64xf32>
    %68 = arith.maximumf %66, %67 : vector<16x64xf32>
    %69 = arith.truncf %68 : vector<16x64xf32> to vector<16x64xbf16>
    %70 = tpu.concatenate %40, %69 in 1 : vector<16x64xbf16>, vector<16x64xbf16> -> vector<16x128xbf16>
    %c0_7 = arith.constant 0 : index
    %c0_8 = arith.constant 0 : index
    %c0_9 = arith.constant 0 : index
    %71 = vector.load %arg4[%c0_7, %c0_8, %c0_9] : memref<2x128x128xbf16, #tpu.memory_space<vmem>>, vector<1x128x128xbf16>
    %72 = vector.shape_cast %71 : vector<1x128x128xbf16> to vector<128x128xbf16>
    %cst_10 = arith.constant dense<0.000000e+00> : vector<16x128xf32>
    %73 = tpu.matmul %70, %72, %cst_10 {dimension_numbers = #tpu.dot_dimension_numbers<[1], [0], [0], [1], [0, 0, 1, 1], [], []>} : vector<16x128xbf16>, vector<128x128xbf16>, vector<16x128xf32> -> vector<16x128xf32>
    %74 = arith.addf %11, %73 : vector<16x128xf32>
    %c6 = arith.constant 6 : index
    %75 = memref.load %arg1[%c6] : memref<12xf32, #tpu.memory_space<smem>>
    %c7 = arith.constant 7 : index
    %76 = memref.load %arg1[%c7] : memref<12xf32, #tpu.memory_space<smem>>
    %c8 = arith.constant 8 : index
    %77 = memref.load %arg1[%c8] : memref<12xf32, #tpu.memory_space<smem>>
    %78 = arith.extf %9 : vector<16x64xbf16> to vector<16x64xf32>
    %79 = vector.broadcast %75 : f32 to vector<16x64xf32>
    %80 = arith.mulf %79, %78 : vector<16x64xf32>
    %81 = arith.extf %7 : vector<16x64xbf16> to vector<16x64xf32>
    %82 = vector.broadcast %76 : f32 to vector<16x64xf32>
    %83 = arith.mulf %82, %81 : vector<16x64xf32>
    %84 = arith.addf %80, %83 : vector<16x64xf32>
    %85 = arith.extf %8 : vector<16x64xbf16> to vector<16x64xf32>
    %86 = vector.broadcast %77 : f32 to vector<16x64xf32>
    %87 = arith.mulf %86, %85 : vector<16x64xf32>
    %88 = arith.addf %84, %87 : vector<16x64xf32>
    %89 = arith.extf %7 : vector<16x64xbf16> to vector<16x64xf32>
    %90 = vector.broadcast %75 : f32 to vector<16x64xf32>
    %91 = arith.mulf %90, %89 : vector<16x64xf32>
    %92 = arith.extf %8 : vector<16x64xbf16> to vector<16x64xf32>
    %93 = vector.broadcast %76 : f32 to vector<16x64xf32>
    %94 = arith.mulf %93, %92 : vector<16x64xf32>
    %95 = arith.addf %91, %94 : vector<16x64xf32>
    %96 = arith.extf %10 : vector<16x64xbf16> to vector<16x64xf32>
    %97 = vector.broadcast %77 : f32 to vector<16x64xf32>
    %98 = arith.mulf %97, %96 : vector<16x64xf32>
    %99 = arith.addf %95, %98 : vector<16x64xf32>
    %100 = arith.maximumf %88, %99 : vector<16x64xf32>
    %cst_11 = arith.constant 0.000000e+00 : f32
    %101 = vector.broadcast %cst_11 : f32 to vector<16x64xf32>
    %102 = arith.maximumf %100, %101 : vector<16x64xf32>
    %103 = arith.truncf %102 : vector<16x64xf32> to vector<16x64xbf16>
    %c9 = arith.constant 9 : index
    %104 = memref.load %arg1[%c9] : memref<12xf32, #tpu.memory_space<smem>>
    %c10 = arith.constant 10 : index
    %105 = memref.load %arg1[%c10] : memref<12xf32, #tpu.memory_space<smem>>
    %c11 = arith.constant 11 : index
    %106 = memref.load %arg1[%c11] : memref<12xf32, #tpu.memory_space<smem>>
    %107 = arith.extf %9 : vector<16x64xbf16> to vector<16x64xf32>
    %108 = vector.broadcast %104 : f32 to vector<16x64xf32>
    %109 = arith.mulf %108, %107 : vector<16x64xf32>
    %110 = arith.extf %7 : vector<16x64xbf16> to vector<16x64xf32>
    %111 = vector.broadcast %105 : f32 to vector<16x64xf32>
    %112 = arith.mulf %111, %110 : vector<16x64xf32>
    %113 = arith.addf %109, %112 : vector<16x64xf32>
    %114 = arith.extf %8 : vector<16x64xbf16> to vector<16x64xf32>
    %115 = vector.broadcast %106 : f32 to vector<16x64xf32>
    %116 = arith.mulf %115, %114 : vector<16x64xf32>
    %117 = arith.addf %113, %116 : vector<16x64xf32>
    %118 = arith.extf %7 : vector<16x64xbf16> to vector<16x64xf32>
    %119 = vector.broadcast %104 : f32 to vector<16x64xf32>
    %120 = arith.mulf %119, %118 : vector<16x64xf32>
    %121 = arith.extf %8 : vector<16x64xbf16> to vector<16x64xf32>
    %122 = vector.broadcast %105 : f32 to vector<16x64xf32>
    %123 = arith.mulf %122, %121 : vector<16x64xf32>
    %124 = arith.addf %120, %123 : vector<16x64xf32>
    %125 = arith.extf %10 : vector<16x64xbf16> to vector<16x64xf32>
    %126 = vector.broadcast %106 : f32 to vector<16x64xf32>
    %127 = arith.mulf %126, %125 : vector<16x64xf32>
    %128 = arith.addf %124, %127 : vector<16x64xf32>
    %129 = arith.maximumf %117, %128 : vector<16x64xf32>
    %cst_12 = arith.constant 0.000000e+00 : f32
    %130 = vector.broadcast %cst_12 : f32 to vector<16x64xf32>
    %131 = arith.maximumf %129, %130 : vector<16x64xf32>
    %132 = arith.truncf %131 : vector<16x64xf32> to vector<16x64xbf16>
    %133 = tpu.concatenate %103, %132 in 1 : vector<16x64xbf16>, vector<16x64xbf16> -> vector<16x128xbf16>
    %c1_13 = arith.constant 1 : index
    %c0_14 = arith.constant 0 : index
    %c0_15 = arith.constant 0 : index
    %134 = vector.load %arg4[%c1_13, %c0_14, %c0_15] : memref<2x128x128xbf16, #tpu.memory_space<vmem>>, vector<1x128x128xbf16>
    %135 = vector.shape_cast %134 : vector<1x128x128xbf16> to vector<128x128xbf16>
    %cst_16 = arith.constant dense<0.000000e+00> : vector<16x128xf32>
    %136 = tpu.matmul %133, %135, %cst_16 {dimension_numbers = #tpu.dot_dimension_numbers<[1], [0], [0], [1], [0, 0, 1, 1], [], []>} : vector<16x128xbf16>, vector<128x128xbf16>, vector<16x128xf32> -> vector<16x128xf32>
    %137 = arith.addf %74, %136 : vector<16x128xf32>
    %c0_17 = arith.constant 0 : index
    %c0_18 = arith.constant 0 : index
    %138 = vector.load %arg5[%c0_17, %c0_18] : memref<1x128xf32, #tpu.memory_space<vmem>>, vector<1x128xf32>
    %139 = vector.broadcast %138 : vector<1x128xf32> to vector<16x128xf32>
    %140 = arith.addf %137, %139 : vector<16x128xf32>
    %c0_19 = arith.constant 0 : index
    %c0_20 = arith.constant 0 : index
    %141 = vector.load %arg6[%c0_19, %c0_20] : memref<16x128xf32, #tpu.memory_space<vmem>>, vector<16x128xf32>
    tpu.vector_store %arg6[%c0_19, %c0_20], %140 {strides = array<i32>} : memref<16x128xf32, #tpu.memory_space<vmem>>, vector<16x128xf32>,
    return
  }
  func.func @transform_0(%arg0: i32) -> i32 {
    %c0_i32 = arith.constant 0 : i32
    %c0_i32_0 = arith.constant 0 : i32
    return %c0_i32 : i32
  }
  func.func @transform_1(%arg0: i32) -> (i32, i32) {
    %c0_i32 = arith.constant 0 : i32
    %c0_i32_0 = arith.constant 0 : i32
    return %arg0, %c0_i32 : i32, i32
  }
  func.func @transform_2(%arg0: i32) -> (i32, i32) {
    %c0_i32 = arith.constant 0 : i32
    %c0_i32_0 = arith.constant 0 : i32
    return %arg0, %c0_i32 : i32, i32
  }
  func.func @transform_3(%arg0: i32) -> (i32, i32, i32) {
    %c0_i32 = arith.constant 0 : i32
    %c0_i32_0 = arith.constant 0 : i32
    %c0_i32_1 = arith.constant 0 : i32
    %c0_i32_2 = arith.constant 0 : i32
    return %c0_i32, %c0_i32_0, %c0_i32_1 : i32, i32, i32
  }
  func.func @transform_4(%arg0: i32) -> (i32, i32) {
    %c0_i32 = arith.constant 0 : i32
    %c0_i32_0 = arith.constant 0 : i32
    %c0_i32_1 = arith.constant 0 : i32
    return %c0_i32, %c0_i32_0 : i32, i32
  }
  func.func @transform_5(%arg0: i32) -> (i32, i32) {
    %c0_i32 = arith.constant 0 : i32
    %c0_i32_0 = arith.constant 0 : i32
    return %arg0, %c0_i32 : i32, i32
  }
}

</mosaic_0001>

<llo_original>
// kernel: tpu_custom_call.1
$region0: #{tpu_custom_call.1}
  #allocation0 [shape = 'u32[]', space=smem, size = 0x4, offset = 0x4, fixed_abs, tag = 'smem constant byte address 0x4 - core index']
  #allocation1 [shape = 'u32[144,128]{1,0:T(1,128)}', space=vmem, size = 0x12000, scoped, tag = 'internal scratch']
  %s0 = inlined_call_operand.hbm [shape: f32[12], index: 0, kind: input, shape index: {}]
  %s1 = inlined_call_operand.hbm [shape: bf16[16,128], index: 1, kind: input, shape index: {}]
  %s2 = inlined_call_operand.hbm [shape: bf16[16,128], index: 2, kind: input, shape index: {}]
  %s3 = inlined_call_operand.hbm [shape: bf16[2,128,128], index: 3, kind: input, shape index: {}]
  %s4 = inlined_call_operand.vmem [shape: f32[1,128], index: 4, kind: input, shape index: {}]
  %s5 = inlined_call_operand.hbm [shape: f32[16,128], index: 5, kind: output, shape index: {}]
  %s6 = sld [smem:[#allocation0]]
  $region46: #{tpu_custom_call.1} parent=0
    _
  %s8 = ssub.s32 1, %s6
  %s9 = scalar_select 0, %s8, %s6
  $region1: #{tpu_custom_call.1} parent=0
    #allocation2 [shape = 'u8[512]{0}', space=smem, size = 0x200, scoped, tag = 'input window, operand 0, single buffered']
    #allocation3 [shape = 's32[1]{0}', space=sflag, size = 0x4, scoped, tag = 'scoped memory for tpu_custom_call.1']
    #allocation4 [shape = 's32[1]{0}', space=sflag, size = 0x4, scoped, tag = 'scoped memory for tpu_custom_call.1']
    #allocation5 [shape = 's32[1]{0}', space=sflag, size = 0x4, scoped, tag = 'scoped memory for tpu_custom_call.1']
    #allocation6 [shape = 'u8[4096]{0}', space=vmem, size = 0x1000, scoped, tag = 'input window, operand 1, single buffered']
    #allocation7 [shape = 'u8[4096]{0}', space=vmem, size = 0x1000, scoped, tag = 'input window, operand 2, single buffered']
    #allocation8 [shape = 's32[1]{0}', space=sflag, size = 0x4, scoped, tag = 'scoped memory for tpu_custom_call.1']
    #allocation9 [shape = 'u8[65536]{0}', space=vmem, size = 0x10000, scoped, tag = 'input window, operand 3, single buffered']
    #allocation10 [shape = 'u8[8192]{0}', space=vmem, size = 0x2000, scoped, tag = 'output window, operand 0, single buffered']
    %10 = vsyncpa [#allocation5], 0
    %11 = vsyncpa [#allocation3], 0
    %12 = vsyncpa [#allocation8], 0
    %13 = vsyncpa [#allocation4], 0
    // Predicated region
    $region2: #{tpu_custom_call.1} parent=1 // pred_check
      _
    $region3: #{tpu_custom_call.1} parent=1 // pred_check_branch
      %15 = sbr.rel (0) target = $region5
    $region4: #{tpu_custom_call.1} parent=1 // pred_region
      %s17 = ssub.s32 16, 16
      %18 = vsyncadd [#allocation5], %s17
      %21 = dma.hbm_to_smem %s0, 16, [#allocation2], [#allocation5]
    $region5: #{tpu_custom_call.1} parent=1 // pred_fallthru
      _
    // Predicated region
    $region6: #{tpu_custom_call.1} parent=1 // pred_check
      _
    $region7: #{tpu_custom_call.1} parent=1 // pred_check_branch
      %23 = sbr.rel (0) target = $region9
    $region8: #{tpu_custom_call.1} parent=1 // pred_region
      %s25 = ssub.s32 128, 128
      %26 = vsyncadd [#allocation3], %s25
      %s27 = sshll.u32 [#allocation6], 4
      %s28 = int_to_ptr.vmem [resolvable:$true] %s27
      %33 = dma.hbm_to_vmem [thread:$0]  %s1, 128, %s28, [#allocation3], 64, 64, 4
    $region9: #{tpu_custom_call.1} parent=1 // pred_fallthru
      _
    // Predicated region
    $region10: #{tpu_custom_call.1} parent=1 // pred_check
      _
    $region11: #{tpu_custom_call.1} parent=1 // pred_check_branch
      %35 = sbr.rel (0) target = $region13
    $region12: #{tpu_custom_call.1} parent=1 // pred_region
      %s37 = ssub.s32 128, 128
      %38 = vsyncadd [#allocation8], %s37
      %s39 = sshll.u32 [#allocation7], 4
      %s40 = int_to_ptr.vmem [resolvable:$true] %s39
      %45 = dma.hbm_to_vmem [thread:$0]  %s2, 128, %s40, [#allocation8], 64, 64, 4
    $region13: #{tpu_custom_call.1} parent=1 // pred_fallthru
      _
    // Predicated region
    $region14: #{tpu_custom_call.1} parent=1 // pred_check
      _
    $region15: #{tpu_custom_call.1} parent=1 // pred_check_branch
      %47 = sbr.rel (0) target = $region17
    $region16: #{tpu_custom_call.1} parent=1 // pred_region
      %s49 = ssub.s32 2048, 2048
      %50 = vsyncadd [#allocation8], %s49
      %s51 = sshll.u32 [#allocation9], 4
      %s52 = int_to_ptr.vmem [resolvable:$true] %s51
      %57 = dma.hbm_to_vmem [thread:$0]  %s3, 2048, %s52, [#allocation8], 64, 64, 4
    $region17: #{tpu_custom_call.1} parent=1 // pred_fallthru
      _
    // Predicated region
    $region18: #{tpu_custom_call.1} parent=1 // pred_check
      _
    $region19: #{tpu_custom_call.1} parent=1 // pred_check_branch
      %59 = sbr.rel (0) target = $region21
    $region20: #{tpu_custom_call.1} parent=1 // pred_region
      _
    $region21: #{tpu_custom_call.1} parent=1 // pred_fallthru
      _
    // Predicated region
    $region22: #{tpu_custom_call.1} parent=1 // pred_check
      _
    $region23: #{tpu_custom_call.1} parent=1 // pred_check_branch
      %61 = sbr.rel (0) target = $region25
    $region24: #{tpu_custom_call.1} parent=1 // pred_region
      %62 = dma.done [#allocation5], 16
    $region25: #{tpu_custom_call.1} parent=1 // pred_fallthru
      _
    // Predicated region
    $region26: #{tpu_custom_call.1} parent=1 // pred_check
      _
    $region27: #{tpu_custom_call.1} parent=1 // pred_check_branch
      %64 = sbr.rel (0) target = $region29
    $region28: #{tpu_custom_call.1} parent=1 // pred_region
      %65 = dma.done [#allocation3], 128
    $region29: #{tpu_custom_call.1} parent=1 // pred_fallthru
      _
    // Predicated region
    $region30: #{tpu_custom_call.1} parent=1 // pred_check
      _
    $region31: #{tpu_custom_call.1} parent=1 // pred_check_branch
      %67 = sbr.rel (0) target = $region33
    $region32: #{tpu_custom_call.1} parent=1 // pred_region
      %68 = dma.done [#allocation8], 128
    $region33: #{tpu_custom_call.1} parent=1 // pred_fallthru
      _
    // Predicated region
    $region34: #{tpu_custom_call.1} parent=1 // pred_check
      _
    $region35: #{tpu_custom_call.1} parent=1 // pred_check_branch
      %70 = sbr.rel (0) target = $region37
    $region36: #{tpu_custom_call.1} parent=1 // pred_region
      %71 = dma.done [#allocation8], 2048
    $region37: #{tpu_custom_call.1} parent=1 // pred_fallthru
      _
    %72 = sfence
    %v74 = vld [vmem:[#allocation6] sm:$0xf]
    %v75 = vld [vmem:[#allocation6 + $0x4] sm:$0xf]
    %v76 = vld [vmem:[#allocation7] sm:$0xf]
    %v77 = vld [vmem:[#allocation7 + $0x4] sm:$0xf]
    %v80 = vunpack.c.l.b16 %v76
    %v81 = vunpack.c.l.b16 %v77
    %v82 = vpack.c.b16 %v81, %v80
    %83 = vrot.lane.b32.xlu0 %v82, 1
    %v84 = vpop.permute.xlu0 %83
    %vm85 = vcmask 7168
    %v88 = vsel %vm85, 0, %v84
    %v92 = vunpack.c.l.b16 %v74
    %v93 = vunpack.c.l.b16 %v75
    %v94 = vpack.c.b16 %v93, %v92
    %95 = vrot.lane.b32.xlu0 %v94, 127
    %v96 = vpop.permute.xlu0 %95
    %vm97 = vcmask 1039360
    %v99 = vsel %vm97, %v96, 0
    %s101 = sld [smem:[#allocation2]]
    %s102 = sld [smem:[#allocation2 + $0x1]]
    %s103 = sld [smem:[#allocation2 + $0x2]]
    %v104 = vunpack.c.l.bf16 %v88
    %v105 = vunpack.c.h.bf16 %v88
    %v106 = vstv %s101
    %v107 = vmul.f32 %v106, %v104
    %v108 = vmul.f32 %v106, %v105
    %v109 = vunpack.c.l.bf16 %v74
    %v110 = vunpack.c.l.bf16 %v75
    %v111 = vstv %s102
    %v112 = vmul.f32 %v111, %v109
    %v113 = vmul.f32 %v111, %v110
    %v114 = vadd.f32 %v107, %v112
    %v115 = vadd.f32 %v108, %v113
    %v116 = vunpack.c.l.bf16 %v76
    %v117 = vunpack.c.l.bf16 %v77
    %v118 = vstv %s103
    %v119 = vmul.f32 %v118, %v116
    %v120 = vmul.f32 %v118, %v117
    %v121 = vadd.f32 %v114, %v119
    %v122 = vadd.f32 %v115, %v120
    %v123 = vmul.f32 %v106, %v109
    %v124 = vmul.f32 %v106, %v110
    %v125 = vmul.f32 %v111, %v116
    %v126 = vmul.f32 %v111, %v117
    %v127 = vadd.f32 %v123, %v125
    %v128 = vadd.f32 %v124, %v126
    %v129 = vunpack.c.l.bf16 %v99
    %v130 = vunpack.c.h.bf16 %v99
    %v131 = vmul.f32 %v118, %v129
    %v132 = vmul.f32 %v118, %v130
    %v133 = vadd.f32 %v127, %v131
    %v134 = vadd.f32 %v128, %v132
    %v135 = vmax.f32 %v121, %v133
    %v136 = vmax.f32 %v122, %v134
    %v137 = vmax.f32 %v135, 0.0
    %v138 = vmax.f32 %v136, 0.0
    %v139 = vpack.c.bf16 %v138, %v137
    %s140 = sld [smem:[#allocation2 + $0x3]]
    %s141 = sld [smem:[#allocation2 + $0x4]]
    %s142 = sld [smem:[#allocation2 + $0x5]]
    %v143 = vstv %s140
    %v144 = vmul.f32 %v143, %v104
    %v145 = vmul.f32 %v143, %v105
    %v146 = vstv %s141
    %v147 = vmul.f32 %v146, %v109
    %v148 = vmul.f32 %v146, %v110
    %v149 = vadd.f32 %v144, %v147
    %v150 = vadd.f32 %v145, %v148
    %v151 = vstv %s142
    %v152 = vmul.f32 %v151, %v116
    %v153 = vmul.f32 %v151, %v117
    %v154 = vadd.f32 %v149, %v152
    %v155 = vadd.f32 %v150, %v153
    %v156 = vmul.f32 %v143, %v109
    %v157 = vmul.f32 %v143, %v110
    %v158 = vmul.f32 %v146, %v116
    %v159 = vmul.f32 %v146, %v117
    %v160 = vadd.f32 %v156, %v158
    %v161 = vadd.f32 %v157, %v159
    %v162 = vmul.f32 %v151, %v129
    %v163 = vmul.f32 %v151, %v130
    %v164 = vadd.f32 %v160, %v162
    %v165 = vadd.f32 %v161, %v163
    %v166 = vmax.f32 %v154, %v164
    %v167 = vmax.f32 %v155, %v165
    %v168 = vmax.f32 %v166, 0.0
    %v169 = vmax.f32 %v167, 0.0
    %v170 = vpack.c.bf16 %v169, %v168
    %172 = vrot.lane.b32.xlu0 %v170, 64
    %v173 = vpop.permute.xlu0 %172
    %vm174 = vcmask 523264
    %v177 = vsel %vm174, %v139, %v173
    %v179 = vld [vmem:[#allocation9] sm:$0xf]
    %v180 = vld [vmem:[#allocation9 + $0x4] sm:$0xf]
    %v181 = vld [vmem:[#allocation9 + $0x8] sm:$0xf]
    %v182 = vld [vmem:[#allocation9 + $0xc] sm:$0xf]
    %v183 = vld [vmem:[#allocation9 + $0x10] sm:$0xf]
    %v184 = vld [vmem:[#allocation9 + $0x14] sm:$0xf]
    %v185 = vld [vmem:[#allocation9 + $0x18] sm:$0xf]
    %v186 = vld [vmem:[#allocation9 + $0x1c] sm:$0xf]
    %v187 = vld [vmem:[#allocation9 + $0x20] sm:$0xf]
    %v188 = vld [vmem:[#allocation9 + $0x24] sm:$0xf]
    %v189 = vld [vmem:[#allocation9 + $0x28] sm:$0xf]
    %v190 = vld [vmem:[#allocation9 + $0x2c] sm:$0xf]
    %v191 = vld [vmem:[#allocation9 + $0x30] sm:$0xf]
    %v192 = vld [vmem:[#allocation9 + $0x34] sm:$0xf]
    %v193 = vld [vmem:[#allocation9 + $0x38] sm:$0xf]
    %v194 = vld [vmem:[#allocation9 + $0x3c] sm:$0xf]
    %s195 = sld [smem:[#allocation2 + $0x6]]
    %s196 = sld [smem:[#allocation2 + $0x7]]
    %s197 = sld [smem:[#allocation2 + $0x8]]
    %v198 = vstv %s195
    %v199 = vmul.f32 %v198, %v104
    %v200 = vmul.f32 %v198, %v105
    %v201 = vstv %s196
    %v202 = vmul.f32 %v201, %v109
    %v203 = vmul.f32 %v201, %v110
    %v204 = vadd.f32 %v199, %v202
    %v205 = vadd.f32 %v200, %v203
    %v206 = vstv %s197
    %v207 = vmul.f32 %v206, %v116
    %v208 = vmul.f32 %v206, %v117
    %v209 = vadd.f32 %v204, %v207
    %v210 = vadd.f32 %v205, %v208
    %v211 = vmul.f32 %v198, %v109
    %v212 = vmul.f32 %v198, %v110
    %v213 = vmul.f32 %v201, %v116
    %v214 = vmul.f32 %v201, %v117
    %v215 = vadd.f32 %v211, %v213
    %v216 = vadd.f32 %v212, %v214
    %v217 = vmul.f32 %v206, %v129
    %v218 = vmul.f32 %v206, %v130
    %v219 = vadd.f32 %v215, %v217
    %v220 = vadd.f32 %v216, %v218
    %v221 = vmax.f32 %v209, %v219
    %v222 = vmax.f32 %v210, %v220
    %v223 = vmax.f32 %v221, 0.0
    %v224 = vmax.f32 %v222, 0.0
    %v225 = vpack.c.bf16 %v224, %v223
    %s226 = sld [smem:[#allocation2 + $0x9]]
    %s227 = sld [smem:[#allocation2 + $0xa]]
    %s228 = sld [smem:[#allocation2 + $0xb]]
    %v229 = vstv %s226
    %v230 = vmul.f32 %v229, %v104
    %v231 = vmul.f32 %v229, %v105
    %v232 = vstv %s227
    %v233 = vmul.f32 %v232, %v109
    %v234 = vmul.f32 %v232, %v110
    %v235 = vadd.f32 %v230, %v233
    %v236 = vadd.f32 %v231, %v234
    %v237 = vstv %s228
    %v238 = vmul.f32 %v237, %v116
    %v239 = vmul.f32 %v237, %v117
    %v240 = vadd.f32 %v235, %v238
    %v241 = vadd.f32 %v236, %v239
    %v242 = vmul.f32 %v229, %v109
    %v243 = vmul.f32 %v229, %v110
    %v244 = vmul.f32 %v232, %v116
    %v245 = vmul.f32 %v232, %v117
    %v246 = vadd.f32 %v242, %v244
    %v247 = vadd.f32 %v243, %v245
    %v248 = vmul.f32 %v237, %v129
    %v249 = vmul.f32 %v237, %v130
    %v250 = vadd.f32 %v246, %v248
    %v251 = vadd.f32 %v247, %v249
    %v252 = vmax.f32 %v240, %v250
    %v253 = vmax.f32 %v241, %v251
    %v254 = vmax.f32 %v252, 0.0
    %v255 = vmax.f32 %v253, 0.0
    %v256 = vpack.c.bf16 %v255, %v254
    %258 = vrot.lane.b32.xlu0 %v256, 64
    %v259 = vpop.permute.xlu0 %258
    %v262 = vsel %vm174, %v225, %v259
    %s264 = scalar_lea.vmem [#allocation9], 64
    %v265 = vld [vmem:[%s264] sm:$0xf]
    %v266 = vld [vmem:[%s264 + $0x4] sm:$0xf]
    %v267 = vld [vmem:[%s264 + $0x8] sm:$0xf]
    %v268 = vld [vmem:[%s264 + $0xc] sm:$0xf]
    %v269 = vld [vmem:[%s264 + $0x10] sm:$0xf]
    %v270 = vld [vmem:[%s264 + $0x14] sm:$0xf]
    %v271 = vld [vmem:[%s264 + $0x18] sm:$0xf]
    %v272 = vld [vmem:[%s264 + $0x1c] sm:$0xf]
    %v273 = vld [vmem:[%s264 + $0x20] sm:$0xf]
    %v274 = vld [vmem:[%s264 + $0x24] sm:$0xf]
    %v275 = vld [vmem:[%s264 + $0x28] sm:$0xf]
    %v276 = vld [vmem:[%s264 + $0x2c] sm:$0xf]
    %v277 = vld [vmem:[%s264 + $0x30] sm:$0xf]
    %v278 = vld [vmem:[%s264 + $0x34] sm:$0xf]
    %v279 = vld [vmem:[%s264 + $0x38] sm:$0xf]
    %v280 = vld [vmem:[%s264 + $0x3c] sm:$0xf]
    %v297 = vunpack.c.l.b16 %v265
    %v298 = vunpack.c.l.b16 %v266
    %v299 = vunpack.c.l.b16 %v267
    %v300 = vunpack.c.l.b16 %v268
    %v301 = vunpack.c.l.b16 %v269
    %v302 = vunpack.c.l.b16 %v270
    %v303 = vunpack.c.l.b16 %v271
    %v304 = vunpack.c.l.b16 %v272
    %v305 = vunpack.c.l.b16 %v273
    %v306 = vunpack.c.l.b16 %v274
    %v307 = vunpack.c.l.b16 %v275
    %v308 = vunpack.c.l.b16 %v276
    %v309 = vunpack.c.l.b16 %v277
    %v310 = vunpack.c.l.b16 %v278
    %v311 = vunpack.c.l.b16 %v279
    %v312 = vunpack.c.l.b16 %v280
    %v313 = vpack.c.b16 %v298, %v297
    %v314 = vpack.c.b16 %v300, %v299
    %v315 = vpack.c.b16 %v302, %v301
    %v316 = vpack.c.b16 %v304, %v303
    %v317 = vpack.c.b16 %v306, %v305
    %v318 = vpack.c.b16 %v308, %v307
    %v319 = vpack.c.b16 %v310, %v309
    %v320 = vpack.c.b16 %v312, %v311
    %329 = vmatprep.subr.bf16.mxu0 0
    %330 = vmatpush1.bf16.msra.mxu0 %v320
    %331 = vmatprep.subr.bf16.mxu0 0
    %332 = vmatpush1.bf16.msra.mxu0 %v319
    %333 = vmatprep.subr.bf16.mxu0 0
    %334 = vmatpush1.bf16.msra.mxu0 %v318
    %335 = vmatprep.subr.bf16.mxu0 0
    %336 = vmatpush1.bf16.msra.mxu0 %v317
    %337 = vmatprep.subr.bf16.mxu0 0
    %338 = vmatpush1.bf16.msra.mxu0 %v316
    %339 = vmatprep.subr.bf16.mxu0 0
    %340 = vmatpush1.bf16.msra.mxu0 %v315
    %341 = vmatprep.subr.bf16.mxu0 0
    %342 = vmatpush1.bf16.msra.mxu0 %v314
    %343 = vmatprep.subr.bf16.mxu0 0
    %344 = vmatpush1.bf16.msra.mxu0 %v313
    %345 = vmatprep.subr.bf16.mxu0 0
    %346 = vmatpush2.bf16.msra.mxu0 0
    %347 = vmatprep.subr.bf16.mxu0 0
    %348 = vmatpush2.bf16.msra.mxu0 0
    %349 = vmatprep.subr.bf16.mxu0 0
    %350 = vmatpush2.bf16.msra.mxu0 0
    %351 = vmatprep.subr.bf16.mxu0 0
    %352 = vmatpush2.bf16.msra.mxu0 0
    %353 = vmatprep.subr.bf16.mxu0 0
    %354 = vmatpush2.bf16.msra.mxu0 0
    %355 = vmatprep.subr.bf16.mxu0 0
    %356 = vmatpush2.bf16.msra.mxu0 0
    %357 = vmatprep.subr.bf16.mxu0 0
    %358 = vmatpush2.bf16.msra.mxu0 0
    %359 = vmatprep.subr.bf16.mxu0 0
    %360 = vmatpush2.bf16.msra.mxu0 0
    %361 = vmatprep.mubr.bf16.mxu0 0
    %362 = vmatmul.mubr.bf16.gmra.mxu0 %v262
    %v363 = vpop.f32.mrf.mxu0
    %v364 = vadd.f32 0.0, %v363
    %v365 = vpop.f32.mrf.mxu0
    %v366 = vpop.f32.mrf.mxu0
    %v367 = vadd.f32 0.0, %v366
    %v368 = vpop.f32.mrf.mxu0
    %369 = vdwg.mxu0
    %v386 = vunpack.c.l.b16 %v179
    %v387 = vunpack.c.l.b16 %v180
    %v388 = vunpack.c.l.b16 %v181
    %v389 = vunpack.c.l.b16 %v182
    %v390 = vunpack.c.l.b16 %v183
    %v391 = vunpack.c.l.b16 %v184
    %v392 = vunpack.c.l.b16 %v185
    %v393 = vunpack.c.l.b16 %v186
    %v394 = vunpack.c.l.b16 %v187
    %v395 = vunpack.c.l.b16 %v188
    %v396 = vunpack.c.l.b16 %v189
    %v397 = vunpack.c.l.b16 %v190
    %v398 = vunpack.c.l.b16 %v191
    %v399 = vunpack.c.l.b16 %v192
    %v400 = vunpack.c.l.b16 %v193
    %v401 = vunpack.c.l.b16 %v194
    %v402 = vpack.c.b16 %v387, %v386
    %v403 = vpack.c.b16 %v389, %v388
    %v404 = vpack.c.b16 %v391, %v390
    %v405 = vpack.c.b16 %v393, %v392
    %v406 = vpack.c.b16 %v395, %v394
    %v407 = vpack.c.b16 %v397, %v396
    %v408 = vpack.c.b16 %v399, %v398
    %v409 = vpack.c.b16 %v401, %v400
    %418 = vmatprep.subr.bf16.mxu0 0
    %419 = vmatpush1.bf16.msra.mxu0 %v409
    %420 = vmatprep.subr.bf16.mxu0 0
    %421 = vmatpush1.bf16.msra.mxu0 %v408
    %422 = vmatprep.subr.bf16.mxu0 0
    %423 = vmatpush1.bf16.msra.mxu0 %v407
    %424 = vmatprep.subr.bf16.mxu0 0
    %425 = vmatpush1.bf16.msra.mxu0 %v406
    %426 = vmatprep.subr.bf16.mxu0 0
    %427 = vmatpush1.bf16.msra.mxu0 %v405
    %428 = vmatprep.subr.bf16.mxu0 0
    %429 = vmatpush1.bf16.msra.mxu0 %v404
    %430 = vmatprep.subr.bf16.mxu0 0
    %431 = vmatpush1.bf16.msra.mxu0 %v403
    %432 = vmatprep.subr.bf16.mxu0 0
    %433 = vmatpush1.bf16.msra.mxu0 %v402
    %434 = vmatprep.subr.bf16.mxu0 0
    %435 = vmatpush2.bf16.msra.mxu0 0
    %436 = vmatprep.subr.bf16.mxu0 0
    %437 = vmatpush2.bf16.msra.mxu0 0
    %438 = vmatprep.subr.bf16.mxu0 0
    %439 = vmatpush2.bf16.msra.mxu0 0
    %440 = vmatprep.subr.bf16.mxu0 0
    %441 = vmatpush2.bf16.msra.mxu0 0
    %442 = vmatprep.subr.bf16.mxu0 0
    %443 = vmatpush2.bf16.msra.mxu0 0
    %444 = vmatprep.subr.bf16.mxu0 0
    %445 = vmatpush2.bf16.msra.mxu0 0
    %446 = vmatprep.subr.bf16.mxu0 0
    %447 = vmatpush2.bf16.msra.mxu0 0
    %448 = vmatprep.subr.bf16.mxu0 0
    %449 = vmatpush2.bf16.msra.mxu0 0
    %450 = vmatprep.mubr.bf16.mxu0 0
    %451 = vmatmul.mubr.bf16.gmra.mxu0 %v177
    %v452 = vpop.f32.mrf.mxu0
    %v453 = vadd.f32 %v364, %v452
    %v454 = vpop.f32.mrf.mxu0
    %v455 = vpop.f32.mrf.mxu0
    %v456 = vadd.f32 %v367, %v455
    %v457 = vpop.f32.mrf.mxu0
    %458 = vdwg.mxu0
    %v459 = vld [vmem:[%s4] sm:$0x1]
    %v461 = vlaneseq
    %v462 = vshrl.u32 %v461, 7
    %v463 = vsub.s32 0, %v462
    %v464 = vrot.slane %v459, %v463
    %v466 = vadd.f32 %v453, %v464
    %v467 = vadd.f32 %v456, %v464
    %468 = vst [vmem:[#allocation10] sm:$0xff] %v466
    %469 = vst [vmem:[#allocation10 + $0x8] sm:$0xff] %v467
    // Predicated region
    $region38: #{tpu_custom_call.1} parent=1 // pred_check
      _
    $region39: #{tpu_custom_call.1} parent=1 // pred_check_branch
      %471 = sbr.rel (0) target = $region41
    $region40: #{tpu_custom_call.1} parent=1 // pred_region
      %s473 = ssub.s32 256, 256
      %474 = vsyncadd [#allocation4], %s473
      %s475 = sshll.u32 [#allocation10], 4
      %s476 = int_to_ptr.vmem [resolvable:$true] %s475
      %481 = dma.vmem_to_hbm [thread:$0]  %s476, 256, %s5, [#allocation4], 128, 128, 8
    $region41: #{tpu_custom_call.1} parent=1 // pred_fallthru
      _
    // Predicated region
    $region42: #{tpu_custom_call.1} parent=1 // pred_check
      _
    $region43: #{tpu_custom_call.1} parent=1 // pred_check_branch
      %483 = sbr.rel (0) target = $region45
    $region44: #{tpu_custom_call.1} parent=1 // pred_region
      %484 = dma.done [#allocation4], 256
    $region45: #{tpu_custom_call.1} parent=1 // pred_fallthru
      _
    %485 = vsyncpa [#allocation3], 1
    %486 = vsyncpa [#allocation8], 1
    %487 = vsyncpa [#allocation4], 1
    %488 = vsyncpa [#allocation5], 1

</llo_original>
